<compile_context>
chip_gen: v6e
topology: v6e:2x2x1
jax: 0.10.0
libtpu: 0.0.40
codegen_flags: <defaults>
</compile_context>

<pallas_src>
import math

import jax
import jax.numpy as jnp
from jax.experimental import pallas as pl
from jax.experimental.pallas import tpu as pltpu


# ----------------------------- buffer construction (matches __init__) -------

def build_positional_encoding_table(d_model, max_len=5000, dtype=jnp.float32):
    """pe buffer with the same values/shape as the PyTorch module: (max_len, 1, d_model)."""
    position = jnp.arange(max_len, dtype=jnp.float32)[:, None]                  # (L, 1)
    div_term = jnp.exp(jnp.arange(0, d_model, 2, dtype=jnp.float32)
                       * (-math.log(10000.0) / d_model))                        # (D/2,)
    ang = position * div_term                                                   # (L, D/2)
    pe = jnp.zeros((max_len, d_model), jnp.float32)
    pe = pe.at[:, 0::2].set(jnp.sin(ang))
    pe = pe.at[:, 1::2].set(jnp.cos(ang))
    return pe[:, None, :].astype(dtype)                                         # (L, 1, D)


# ----------------------------- Pallas kernel --------------------------------

def _pos_enc_kernel(x_ref, pe_ref, o_ref):
    # x: (TT, B, D), pe: (TT, 1, D) -> broadcast-add over the batch axis.
    o_ref[...] = x_ref[...] + pe_ref[...]


def _pick_tile(total, target):
    """Largest divisor of `total` that is <= target (keeps the grid exact)."""
    tt = max(1, min(target, total))
    while total % tt:
        tt -= 1
    return tt


def positional_encoding_forward(x, pe, *, block_t=256):
    """Equivalent of PositionalEncoding.forward(x) in eval mode.

    x : (T, B, d_model) seq-first activations (PyTorch convention).
    pe: (max_len, 1, d_model) constant table from build_positional_encoding_table.
    """
    T, B, D = x.shape
    pe_slice = pe[:T].astype(x.dtype)                                           # (T, 1, D)

    TT = _pick_tile(T, block_t)
    grid = (T // TT,)

    out = pl.pallas_call(
        _pos_enc_kernel,
        out_shape=jax.ShapeDtypeStruct((T, B, D), x.dtype),
        grid=grid,
        in_specs=[
            pl.BlockSpec((TT, B, D), lambda i: (i, 0, 0)),   # activations, tiled over seq
            pl.BlockSpec((TT, 1, D), lambda i: (i, 0, 0)),   # pe rows for this tile
        ],
        out_specs=pl.BlockSpec((TT, B, D), lambda i: (i, 0, 0)),
        compiler_params=pltpu.CompilerParams(dimension_semantics=("parallel",)),
    )(x, pe_slice)
    # TODO(synk): nn.Dropout(p=0.1) is stochastic training-time behavior and is treated
    # as identity (eval mode); it could be added with pltpu.prng_seed/prng_random_bits.
    return out


# ----------------------------- reference & main ------------------------------

def reference_forward(x, pe):
    T = x.shape[0]
    return x + pe[:T].astype(x.dtype)


if __name__ == "__main__":
    # Small shapes consistent with the module's seq-first input: (T, B, d_model).
    # D=128 keeps the last dim lane-dense; block_t=64 gives a 4-step parallel grid.
    T, B, D = 256, 4, 128
    max_len = 5000

    key = jax.random.PRNGKey(0)
    x = jax.random.normal(key, (T, B, D), jnp.float32)
    pe = build_positional_encoding_table(D, max_len=max_len)

    out = positional_encoding_forward(x, pe, block_t=64)
    out = jax.block_until_ready(out)

    ref = reference_forward(x, pe)
    assert out.shape == (T, B, D), out.shape
    assert jnp.allclose(out, ref, atol=1e-6, rtol=1e-6), "mismatch vs pure-JAX reference"
    print("KERNEL_OK")
</pallas_src>

<mosaic_0001>
module attributes {stable_mosaic.version = 11 : i64} {
  func.func @_pos_enc_kernel(%arg0: i32, %arg1: memref<64x4x128xf32, #tpu.memory_space<vmem>>, %arg2: memref<64x1x128xf32, #tpu.memory_space<vmem>>, %arg3: memref<64x4x128xf32, #tpu.memory_space<vmem>>) attributes {dimension_semantics = [#tpu.dimension_semantics<parallel>], iteration_bounds = array<i64: 4>, scalar_prefetch = 0 : i64, scratch_operands = 0 : i64, tpu.core_type = #tpu.core_type<tc>, window_params = [{transform_indices = @transform_0, window_bounds = array<i64: 64, 4, 128>}, {transform_indices = @transform_1, window_bounds = array<i64: 64, 1, 128>}, {transform_indices = @transform_2, window_bounds = array<i64: 64, 4, 128>}]} {
    %c0 = arith.constant 0 : index
    %c0_0 = arith.constant 0 : index
    %c0_1 = arith.constant 0 : index
    %0 = vector.load %arg1[%c0, %c0_0, %c0_1] : memref<64x4x128xf32, #tpu.memory_space<vmem>>, vector<64x4x128xf32>
    %c0_2 = arith.constant 0 : index
    %c0_3 = arith.constant 0 : index
    %c0_4 = arith.constant 0 : index
    %1 = vector.load %arg2[%c0_2, %c0_3, %c0_4] : memref<64x1x128xf32, #tpu.memory_space<vmem>>, vector<64x1x128xf32>
    %2 = vector.broadcast %1 : vector<64x1x128xf32> to vector<64x4x128xf32>
    %3 = arith.addf %0, %2 : vector<64x4x128xf32>
    %c0_5 = arith.constant 0 : index
    %c0_6 = arith.constant 0 : index
    %c0_7 = arith.constant 0 : index
    %4 = vector.load %arg3[%c0_5, %c0_6, %c0_7] : memref<64x4x128xf32, #tpu.memory_space<vmem>>, vector<64x4x128xf32>
    tpu.vector_store %arg3[%c0_5, %c0_6, %c0_7], %3 {strides = array<i32>} : memref<64x4x128xf32, #tpu.memory_space<vmem>>, vector<64x4x128xf32>,
    return
  }
  func.func @transform_0(%arg0: i32) -> (i32, i32, i32) {
    %c0_i32 = arith.constant 0 : i32
    %c0_i32_0 = arith.constant 0 : i32
    %c0_i32_1 = arith.constant 0 : i32
    return %arg0, %c0_i32, %c0_i32_0 : i32, i32, i32
  }
  func.func @transform_1(%arg0: i32) -> (i32, i32, i32) {
    %c0_i32 = arith.constant 0 : i32
    %c0_i32_0 = arith.constant 0 : i32
    %c0_i32_1 = arith.constant 0 : i32
    return %arg0, %c0_i32, %c0_i32_0 : i32, i32, i32
  }
  func.func @transform_2(%arg0: i32) -> (i32, i32, i32) {
    %c0_i32 = arith.constant 0 : i32
    %c0_i32_0 = arith.constant 0 : i32
    %c0_i32_1 = arith.constant 0 : i32
    return %arg0, %c0_i32, %c0_i32_0 : i32, i32, i32
  }
}

</mosaic_0001>

<llo_original>
// kernel: tpu_custom_call.1
$region0: #{tpu_custom_call.1}
  #allocation0 [shape = 'u32[]', space=smem, size = 0x4, offset = 0x4, fixed_abs, tag = 'smem constant byte address 0x4 - core index']
  #allocation1 [shape = 'u32[144,128]{1,0:T(1,128)}', space=vmem, size = 0x12000, scoped, tag = 'internal scratch']
  %s0 = inlined_call_operand.hbm [shape: f32[256,4,128], index: 0, kind: input, shape index: {}]
  %s1 = inlined_call_operand.hbm [shape: f32[256,1,128], index: 1, kind: input, shape index: {}]
  %s2 = inlined_call_operand.hbm [shape: f32[256,4,128], index: 2, kind: output, shape index: {}]
  %s3 = sld [smem:[#allocation0]]
  $region49: #{tpu_custom_call.1} parent=0
    _
  %s5 = ssub.s32 1, %s3
  %s6 = scalar_select 0, %s5, %s3
  $region1: #{tpu_custom_call.1} parent=0
    #allocation2 [shape = 'u8[262144]{0}', space=vmem, size = 0x40000, scoped, tag = 'input window, operand 0']
    #allocation3 [shape = 's32[2]{0}', space=sflag, size = 0x8, scoped, tag = 'scoped memory for tpu_custom_call.1']
    #allocation4 [shape = 's32[2]{0}', space=sflag, size = 0x8, scoped, tag = 'scoped memory for tpu_custom_call.1']
    #allocation5 [shape = 'u8[65536]{0}', space=vmem, size = 0x10000, scoped, tag = 'input window, operand 1']
    #allocation6 [shape = 's32[2]{0}', space=sflag, size = 0x8, scoped, tag = 'scoped memory for tpu_custom_call.1']
    #allocation7 [shape = 'u8[262144]{0}', space=vmem, size = 0x40000, scoped, tag = 'output window, operand 0']
    %7 = vsyncpa [#allocation3], 0
    %s8 = scalar_lea.sflag [#allocation3], 1
    %9 = vsyncpa %s8, 0
    %10 = vsyncpa [#allocation6], 0
    %s11 = scalar_lea.sflag [#allocation6], 1
    %12 = vsyncpa %s11, 0
    %13 = vsyncpa [#allocation4], 0
    %s14 = scalar_lea.sflag [#allocation4], 1
    %15 = vsyncpa %s14, 0
    loop: start=0, step=1, limit=6
    $region2: #{tpu_custom_call.1} parent=1 // loop_pre_header
      _
    $region3: #{tpu_custom_call.1} parent=1 // loop_header
      %s17 = sphi 0, %s21
      %p18 = scmp.ge.s32.totalorder %s17, 6
      %s27 = sphi 0, %s29
      %s30 = sphi 0, %s27
      %s31 = sphi 0, %s30
      %s47 = sphi 0, %s31
      %s53 = sphi 0, %s55
      %s56 = sphi 0, %s53
      %s57 = sphi 0, %s56
      %s73 = sphi 0, %s57
      %s79 = sphi 0, %s81
      %s82 = sphi 0, %s79
      %s83 = sphi 0, %s82
      %s99 = sphi 0, %s83
    $region4: #{tpu_custom_call.1} parent=1 // loop_header_branch
      %20 = sbr.rel (%p18) target = $region8
    $region5: #{tpu_custom_call.1} parent=1 // loop_body
      %s22 = ssub.s32 %s17, 1
      %s23 = ssub.s32 %s17, 2
      %s24 = sadd.s32 %s17, 1
      %s25 = ssub.s32 %s17, %s24
      %p26 = scmp.eq.s32.totalorder %s25, 0
      %s28 = sadd.s32 %s27, 1
      %s29 = scalar_select %p26, %s27, %s28
      %p32 = pneg %p26
      %p33 = scmp.eq.s32.totalorder %s17, 3
      %p34 = por %p32, %p33
      %p35 = scmp.ne.s32.totalorder %s27, %s30
      %p36 = scmp.eq.s32.totalorder %s17, 0
      %p37 = por %p35, %p36
      %p38 = scmp.ne.s32.totalorder %s27, %s30
      %p39 = scmp.eq.s32.totalorder %s22, 3
      %p40 = por %p38, %p39
      %p41 = scmp.ne.s32.totalorder %s30, %s31
      %p42 = scmp.eq.s32.totalorder %s22, 0
      %p43 = por %p41, %p42
      %p44 = scmp.ne.s32.totalorder %s30, %s31
      %p45 = scmp.eq.s32.totalorder %s23, 3
      %p46 = por %p44, %p45
      %p48 = scmp.ne.s32.totalorder %s31, %s47
      %p49 = scmp.eq.s32.totalorder %s23, 0
      %p50 = por %p48, %p49
      %s51 = ssub.s32 %s17, %s24
      %p52 = scmp.eq.s32.totalorder %s51, 0
      %s54 = sadd.s32 %s53, 1
      %s55 = scalar_select %p52, %s53, %s54
      %p58 = pneg %p52
      %p59 = scmp.eq.s32.totalorder %s17, 3
      %p60 = por %p58, %p59
      %p61 = scmp.ne.s32.totalorder %s53, %s56
      %p62 = scmp.eq.s32.totalorder %s17, 0
      %p63 = por %p61, %p62
      %p64 = scmp.ne.s32.totalorder %s53, %s56
      %p65 = scmp.eq.s32.totalorder %s22, 3
      %p66 = por %p64, %p65
      %p67 = scmp.ne.s32.totalorder %s56, %s57
      %p68 = scmp.eq.s32.totalorder %s22, 0
      %p69 = por %p67, %p68
      %p70 = scmp.ne.s32.totalorder %s56, %s57
      %p71 = scmp.eq.s32.totalorder %s23, 3
      %p72 = por %p70, %p71
      %p74 = scmp.ne.s32.totalorder %s57, %s73
      %p75 = scmp.eq.s32.totalorder %s23, 0
      %p76 = por %p74, %p75
      %s77 = ssub.s32 %s17, %s24
      %p78 = scmp.eq.s32.totalorder %s77, 0
      %s80 = sadd.s32 %s79, 1
      %s81 = scalar_select %p78, %s79, %s80
      %p84 = pneg %p78
      %p85 = scmp.eq.s32.totalorder %s17, 3
      %p86 = por %p84, %p85
      %p87 = scmp.ne.s32.totalorder %s79, %s82
      %p88 = scmp.eq.s32.totalorder %s17, 0
      %p89 = por %p87, %p88
      %p90 = scmp.ne.s32.totalorder %s79, %s82
      %p91 = scmp.eq.s32.totalorder %s22, 3
      %p92 = por %p90, %p91
      %p93 = scmp.ne.s32.totalorder %s82, %s83
      %p94 = scmp.eq.s32.totalorder %s22, 0
      %p95 = por %p93, %p94
      %p96 = scmp.ne.s32.totalorder %s82, %s83
      %p97 = scmp.eq.s32.totalorder %s23, 3
      %p98 = por %p96, %p97
      %p100 = scmp.ne.s32.totalorder %s83, %s99
      %p101 = scmp.eq.s32.totalorder %s23, 0
      %p102 = por %p100, %p101
      %p103 = scmp.le.s32.totalorder 1, %s17
      %p104 = scmp.lt.s32.totalorder %s17, 5
      %p105 = pnand %p103, %p104
      %p106 = pneg %p105
      // Predicated region
      $region9: #{tpu_custom_call.1} parent=5 // pred_check
        _
      $region10: #{tpu_custom_call.1} parent=5 // pred_check_branch
        %108 = sbr.rel (%p105) target = $region12
      $region11: #{tpu_custom_call.1} parent=5 // pred_region
        %s109 = ssub.s32 %s17, 1
      $region12: #{tpu_custom_call.1} parent=5 // pred_fallthru
        _
      %p110 = scmp.lt.s32.totalorder %s17, 4
      // Predicated region
      $region13: #{tpu_custom_call.1} parent=5 // pred_check
        %p111 = pneg %p110
      $region14: #{tpu_custom_call.1} parent=5 // pred_check_branch
        %113 = sbr.rel (%p111) target = $region16
      $region15: #{tpu_custom_call.1} parent=5 // pred_region
        // Predicated region
        $region17: #{tpu_custom_call.1} parent=15 // pred_check
          %p114 = pneg %p37
        $region18: #{tpu_custom_call.1} parent=15 // pred_check_branch
          %116 = sbr.rel (%p114) target = $region20
        $region19: #{tpu_custom_call.1} parent=15 // pred_region
          %s117 = sand.u32 %s27, 1
          %s118 = scalar_lea.sflag [#allocation3], %s117
          %s119 = sand.u32 %s27, 1
          %s120 = smul.addr %s119, 256
          %s121 = scalar_lea.vmem [#allocation2], %s120
          %s122 = smul.u32 64, %s17
          %s124 = ssub.s32 4096, 4096
          %125 = vsyncadd %s118, %s124
          %s126 = smul.addr %s122, 64
          %s127 = scalar_lea.hbm %s0, %s126
          %s128 = sshll.u32 %s121, 4
          %s129 = int_to_ptr.vmem [resolvable:$true] %s128
          %134 = dma.hbm_to_vmem [thread:$0]  %s127, 4096, %s129, %s118, 64, 64, 4
        $region20: #{tpu_custom_call.1} parent=15 // pred_fallthru
          _
        // Predicated region
        $region21: #{tpu_custom_call.1} parent=15 // pred_check
          %p135 = pneg %p63
        $region22: #{tpu_custom_call.1} parent=15 // pred_check_branch
          %137 = sbr.rel (%p135) target = $region24
        $region23: #{tpu_custom_call.1} parent=15 // pred_region
          %s138 = sand.u32 %s53, 1
          %s139 = scalar_lea.sflag [#allocation6], %s138
          %s140 = sand.u32 %s53, 1
          %s141 = smul.addr %s140, 64
          %s142 = scalar_lea.vmem [#allocation5], %s141
          %s143 = smul.u32 64, %s17
          %s145 = ssub.s32 1024, 1024
          %146 = vsyncadd %s139, %s145
          %s147 = smul.addr %s143, 16
          %s148 = scalar_lea.hbm %s1, %s147
          %s149 = sshll.u32 %s142, 4
          %s150 = int_to_ptr.vmem [resolvable:$true] %s149
          %155 = dma.hbm_to_vmem [thread:$0]  %s148, 1024, %s150, %s139, 16, 16, 1
        $region24: #{tpu_custom_call.1} parent=15 // pred_fallthru
          _
      $region16: #{tpu_custom_call.1} parent=5 // pred_fallthru
        _
      %p156 = scmp.le.s32.totalorder 1, %s17
      %p157 = scmp.lt.s32.totalorder %s17, 5
      %p158 = pnand %p156, %p157
      %p159 = pneg %p158
      // Predicated region
      $region25: #{tpu_custom_call.1} parent=5 // pred_check
        _
      $region26: #{tpu_custom_call.1} parent=5 // pred_check_branch
        %161 = sbr.rel (%p158) target = $region28
      $region27: #{tpu_custom_call.1} parent=5 // pred_region
        %s162 = ssub.s32 %s17, 1
        %s163 = sand.u32 %s30, 1
        %s164 = scalar_lea.sflag [#allocation3], %s163
        %s165 = sand.u32 %s30, 1
        %s166 = smul.addr %s165, 256
        %s167 = scalar_lea.vmem [#allocation2], %s166
        // Predicated region
        $region29: #{tpu_custom_call.1} parent=27 // pred_check
          %p168 = pneg %p43
        $region30: #{tpu_custom_call.1} parent=27 // pred_check_branch
          %170 = sbr.rel (%p168) target = $region32
        $region31: #{tpu_custom_call.1} parent=27 // pred_region
          %171 = dma.done %s164, 4096
        $region32: #{tpu_custom_call.1} parent=27 // pred_fallthru
          _
        %s172 = sand.u32 %s56, 1
        %s173 = scalar_lea.sflag [#allocation6], %s172
        %s174 = sand.u32 %s56, 1
        %s175 = smul.addr %s174, 64
        %s176 = scalar_lea.vmem [#allocation5], %s175
        // Predicated region
        $region33: #{tpu_custom_call.1} parent=27 // pred_check
          %p177 = pneg %p69
        $region34: #{tpu_custom_call.1} parent=27 // pred_check_branch
          %179 = sbr.rel (%p177) target = $region36
        $region35: #{tpu_custom_call.1} parent=27 // pred_region
          %180 = dma.done %s173, 1024
        $region36: #{tpu_custom_call.1} parent=27 // pred_fallthru
          _
        %s181 = sand.u32 %s30, 1
        %s182 = scalar_lea.sflag [#allocation3], %s181
        %s183 = sand.u32 %s30, 1
        %s184 = smul.addr %s183, 256
        %s185 = scalar_lea.vmem [#allocation2], %s184
        %p186 = pneg %p43
        %p187 = pneg %p40
        %s188 = sand.u32 %s56, 1
        %s189 = scalar_lea.sflag [#allocation6], %s188
        %s190 = sand.u32 %s56, 1
        %s191 = smul.addr %s190, 64
        %s192 = scalar_lea.vmem [#allocation5], %s191
        %p193 = pneg %p69
        %p194 = pneg %p66
        %p195 = pneg %p95
        %p196 = pneg %p92
        %s197 = sand.u32 %s82, 1
        %s198 = scalar_lea.sflag [#allocation4], %s197
        %s199 = sand.u32 %s82, 1
        %s200 = smul.addr %s199, 256
        %s201 = scalar_lea.vmem [#allocation7], %s200
        %s202 = smul.u32 64, %s22
        %s203 = smul.u32 64, %s22
        %s204 = smul.u32 64, %s22
        %v205 = vld [vmem:[%s167] sm:$0xf]
        %v206 = vld [vmem:[%s167 + $0x4] sm:$0xf]
        %v207 = vld [vmem:[%s167 + $0x8] sm:$0xf]
        %v208 = vld [vmem:[%s167 + $0xc] sm:$0xf]
        %v209 = vld [vmem:[%s167 + $0x10] sm:$0xf]
        %v210 = vld [vmem:[%s167 + $0x14] sm:$0xf]
        %v211 = vld [vmem:[%s167 + $0x18] sm:$0xf]
        %v212 = vld [vmem:[%s167 + $0x1c] sm:$0xf]
        %v213 = vld [vmem:[%s167 + $0x20] sm:$0xf]
        %v214 = vld [vmem:[%s167 + $0x24] sm:$0xf]
        %v215 = vld [vmem:[%s167 + $0x28] sm:$0xf]
        %v216 = vld [vmem:[%s167 + $0x2c] sm:$0xf]
        %v217 = vld [vmem:[%s167 + $0x30] sm:$0xf]
        %v218 = vld [vmem:[%s167 + $0x34] sm:$0xf]
        %v219 = vld [vmem:[%s167 + $0x38] sm:$0xf]
        %v220 = vld [vmem:[%s167 + $0x3c] sm:$0xf]
        %v221 = vld [vmem:[%s167 + $0x40] sm:$0xf]
        %v222 = vld [vmem:[%s167 + $0x44] sm:$0xf]
        %v223 = vld [vmem:[%s167 + $0x48] sm:$0xf]
        %v224 = vld [vmem:[%s167 + $0x4c] sm:$0xf]
        %v225 = vld [vmem:[%s167 + $0x50] sm:$0xf]
        %v226 = vld [vmem:[%s167 + $0x54] sm:$0xf]
        %v227 = vld [vmem:[%s167 + $0x58] sm:$0xf]
        %v228 = vld [vmem:[%s167 + $0x5c] sm:$0xf]
        %v229 = vld [vmem:[%s167 + $0x60] sm:$0xf]
        %v230 = vld [vmem:[%s167 + $0x64] sm:$0xf]
        %v231 = vld [vmem:[%s167 + $0x68] sm:$0xf]
        %v232 = vld [vmem:[%s167 + $0x6c] sm:$0xf]
        %v233 = vld [vmem:[%s167 + $0x70] sm:$0xf]
        %v234 = vld [vmem:[%s167 + $0x74] sm:$0xf]
        %v235 = vld [vmem:[%s167 + $0x78] sm:$0xf]
        %v236 = vld [vmem:[%s167 + $0x7c] sm:$0xf]
        %v237 = vld [vmem:[%s167 + $0x80] sm:$0xf]
        %v238 = vld [vmem:[%s167 + $0x84] sm:$0xf]
        %v239 = vld [vmem:[%s167 + $0x88] sm:$0xf]
        %v240 = vld [vmem:[%s167 + $0x8c] sm:$0xf]
        %v241 = vld [vmem:[%s167 + $0x90] sm:$0xf]
        %v242 = vld [vmem:[%s167 + $0x94] sm:$0xf]
        %v243 = vld [vmem:[%s167 + $0x98] sm:$0xf]
        %v244 = vld [vmem:[%s167 + $0x9c] sm:$0xf]
        %v245 = vld [vmem:[%s167 + $0xa0] sm:$0xf]
        %v246 = vld [vmem:[%s167 + $0xa4] sm:$0xf]
        %v247 = vld [vmem:[%s167 + $0xa8] sm:$0xf]
        %v248 = vld [vmem:[%s167 + $0xac] sm:$0xf]
        %v249 = vld [vmem:[%s167 + $0xb0] sm:$0xf]
        %v250 = vld [vmem:[%s167 + $0xb4] sm:$0xf]
        %v251 = vld [vmem:[%s167 + $0xb8] sm:$0xf]
        %v252 = vld [vmem:[%s167 + $0xbc] sm:$0xf]
        %v253 = vld [vmem:[%s167 + $0xc0] sm:$0xf]
        %v254 = vld [vmem:[%s167 + $0xc4] sm:$0xf]
        %v255 = vld [vmem:[%s167 + $0xc8] sm:$0xf]
        %v256 = vld [vmem:[%s167 + $0xcc] sm:$0xf]
        %v257 = vld [vmem:[%s167 + $0xd0] sm:$0xf]
        %v258 = vld [vmem:[%s167 + $0xd4] sm:$0xf]
        %v259 = vld [vmem:[%s167 + $0xd8] sm:$0xf]
        %v260 = vld [vmem:[%s167 + $0xdc] sm:$0xf]
        %v261 = vld [vmem:[%s167 + $0xe0] sm:$0xf]
        %v262 = vld [vmem:[%s167 + $0xe4] sm:$0xf]
        %v263 = vld [vmem:[%s167 + $0xe8] sm:$0xf]
        %v264 = vld [vmem:[%s167 + $0xec] sm:$0xf]
        %v265 = vld [vmem:[%s167 + $0xf0] sm:$0xf]
        %v266 = vld [vmem:[%s167 + $0xf4] sm:$0xf]
        %v267 = vld [vmem:[%s167 + $0xf8] sm:$0xf]
        %v268 = vld [vmem:[%s167 + $0xfc] sm:$0xf]
        %v269 = vld [vmem:[%s176] sm:$0x1]
        %v270 = vld [vmem:[%s176 + $0x1] sm:$0x1]
        %v271 = vld [vmem:[%s176 + $0x2] sm:$0x1]
        %v272 = vld [vmem:[%s176 + $0x3] sm:$0x1]
        %v273 = vld [vmem:[%s176 + $0x4] sm:$0x1]
        %v274 = vld [vmem:[%s176 + $0x5] sm:$0x1]
        %v275 = vld [vmem:[%s176 + $0x6] sm:$0x1]
        %v276 = vld [vmem:[%s176 + $0x7] sm:$0x1]
        %v277 = vld [vmem:[%s176 + $0x8] sm:$0x1]
        %v278 = vld [vmem:[%s176 + $0x9] sm:$0x1]
        %v279 = vld [vmem:[%s176 + $0xa] sm:$0x1]
        %v280 = vld [vmem:[%s176 + $0xb] sm:$0x1]
        %v281 = vld [vmem:[%s176 + $0xc] sm:$0x1]
        %v282 = vld [vmem:[%s176 + $0xd] sm:$0x1]
        %v283 = vld [vmem:[%s176 + $0xe] sm:$0x1]
        %v284 = vld [vmem:[%s176 + $0xf] sm:$0x1]
        %v285 = vld [vmem:[%s176 + $0x10] sm:$0x1]
        %v286 = vld [vmem:[%s176 + $0x11] sm:$0x1]
        %v287 = vld [vmem:[%s176 + $0x12] sm:$0x1]
        %v288 = vld [vmem:[%s176 + $0x13] sm:$0x1]
        %v289 = vld [vmem:[%s176 + $0x14] sm:$0x1]
        %v290 = vld [vmem:[%s176 + $0x15] sm:$0x1]
        %v291 = vld [vmem:[%s176 + $0x16] sm:$0x1]
        %v292 = vld [vmem:[%s176 + $0x17] sm:$0x1]
        %v293 = vld [vmem:[%s176 + $0x18] sm:$0x1]
        %v294 = vld [vmem:[%s176 + $0x19] sm:$0x1]
        %v295 = vld [vmem:[%s176 + $0x1a] sm:$0x1]
        %v296 = vld [vmem:[%s176 + $0x1b] sm:$0x1]
        %v297 = vld [vmem:[%s176 + $0x1c] sm:$0x1]
        %v298 = vld [vmem:[%s176 + $0x1d] sm:$0x1]
        %v299 = vld [vmem:[%s176 + $0x1e] sm:$0x1]
        %v300 = vld [vmem:[%s176 + $0x1f] sm:$0x1]
        %v301 = vld [vmem:[%s176 + $0x20] sm:$0x1]
        %v302 = vld [vmem:[%s176 + $0x21] sm:$0x1]
        %v303 = vld [vmem:[%s176 + $0x22] sm:$0x1]
        %v304 = vld [vmem:[%s176 + $0x23] sm:$0x1]
        %v305 = vld [vmem:[%s176 + $0x24] sm:$0x1]
        %v306 = vld [vmem:[%s176 + $0x25] sm:$0x1]
        %v307 = vld [vmem:[%s176 + $0x26] sm:$0x1]
        %v308 = vld [vmem:[%s176 + $0x27] sm:$0x1]
        %v309 = vld [vmem:[%s176 + $0x28] sm:$0x1]
        %v310 = vld [vmem:[%s176 + $0x29] sm:$0x1]
        %v311 = vld [vmem:[%s176 + $0x2a] sm:$0x1]
        %v312 = vld [vmem:[%s176 + $0x2b] sm:$0x1]
        %v313 = vld [vmem:[%s176 + $0x2c] sm:$0x1]
        %v314 = vld [vmem:[%s176 + $0x2d] sm:$0x1]
        %v315 = vld [vmem:[%s176 + $0x2e] sm:$0x1]
        %v316 = vld [vmem:[%s176 + $0x2f] sm:$0x1]
        %v317 = vld [vmem:[%s176 + $0x30] sm:$0x1]
        %v318 = vld [vmem:[%s176 + $0x31] sm:$0x1]
        %v319 = vld [vmem:[%s176 + $0x32] sm:$0x1]
        %v320 = vld [vmem:[%s176 + $0x33] sm:$0x1]
        %v321 = vld [vmem:[%s176 + $0x34] sm:$0x1]
        %v322 = vld [vmem:[%s176 + $0x35] sm:$0x1]
        %v323 = vld [vmem:[%s176 + $0x36] sm:$0x1]
        %v324 = vld [vmem:[%s176 + $0x37] sm:$0x1]
        %v325 = vld [vmem:[%s176 + $0x38] sm:$0x1]
        %v326 = vld [vmem:[%s176 + $0x39] sm:$0x1]
        %v327 = vld [vmem:[%s176 + $0x3a] sm:$0x1]
        %v328 = vld [vmem:[%s176 + $0x3b] sm:$0x1]
        %v329 = vld [vmem:[%s176 + $0x3c] sm:$0x1]
        %v330 = vld [vmem:[%s176 + $0x3d] sm:$0x1]
        %v331 = vld [vmem:[%s176 + $0x3e] sm:$0x1]
        %v332 = vld [vmem:[%s176 + $0x3f] sm:$0x1]
        %v397 = vlaneseq
        %v398 = vshrl.u32 %v397, 7
        %v399 = vsub.s32 0, %v398
        %v400 = vrot.slane %v269, %v399
        %v401 = vlaneseq
        %v402 = vshrl.u32 %v401, 7
        %v403 = vsub.s32 0, %v402
        %v404 = vrot.slane %v270, %v403
        %v405 = vlaneseq
        %v406 = vshrl.u32 %v405, 7
        %v407 = vsub.s32 0, %v406
        %v408 = vrot.slane %v271, %v407
        %v409 = vlaneseq
        %v410 = vshrl.u32 %v409, 7
        %v411 = vsub.s32 0, %v410
        %v412 = vrot.slane %v272, %v411
        %v413 = vlaneseq
        %v414 = vshrl.u32 %v413, 7
        %v415 = vsub.s32 0, %v414
        %v416 = vrot.slane %v273, %v415
        %v417 = vlaneseq
        %v418 = vshrl.u32 %v417, 7
        %v419 = vsub.s32 0, %v418
        %v420 = vrot.slane %v274, %v419
        %v421 = vlaneseq
        %v422 = vshrl.u32 %v421, 7
        %v423 = vsub.s32 0, %v422
        %v424 = vrot.slane %v275, %v423
        %v425 = vlaneseq
        %v426 = vshrl.u32 %v425, 7
        %v427 = vsub.s32 0, %v426
        %v428 = vrot.slane %v276, %v427
        %v429 = vlaneseq
        %v430 = vshrl.u32 %v429, 7
        %v431 = vsub.s32 0, %v430
        %v432 = vrot.slane %v277, %v431
        %v433 = vlaneseq
        %v434 = vshrl.u32 %v433, 7
        %v435 = vsub.s32 0, %v434
        %v436 = vrot.slane %v278, %v435
        %v437 = vlaneseq
        %v438 = vshrl.u32 %v437, 7
        %v439 = vsub.s32 0, %v438
        %v440 = vrot.slane %v279, %v439
        %v441 = vlaneseq
        %v442 = vshrl.u32 %v441, 7
        %v443 = vsub.s32 0, %v442
        %v444 = vrot.slane %v280, %v443
        %v445 = vlaneseq
        %v446 = vshrl.u32 %v445, 7
        %v447 = vsub.s32 0, %v446
        %v448 = vrot.slane %v281, %v447
        %v449 = vlaneseq
        %v450 = vshrl.u32 %v449, 7
        %v451 = vsub.s32 0, %v450
        %v452 = vrot.slane %v282, %v451
        %v453 = vlaneseq
        %v454 = vshrl.u32 %v453, 7
        %v455 = vsub.s32 0, %v454
        %v456 = vrot.slane %v283, %v455
        %v457 = vlaneseq
        %v458 = vshrl.u32 %v457, 7
        %v459 = vsub.s32 0, %v458
        %v460 = vrot.slane %v284, %v459
        %v461 = vlaneseq
        %v462 = vshrl.u32 %v461, 7
        %v463 = vsub.s32 0, %v462
        %v464 = vrot.slane %v285, %v463
        %v465 = vlaneseq
        %v466 = vshrl.u32 %v465, 7
        %v467 = vsub.s32 0, %v466
        %v468 = vrot.slane %v286, %v467
        %v469 = vlaneseq
        %v470 = vshrl.u32 %v469, 7
        %v471 = vsub.s32 0, %v470
        %v472 = vrot.slane %v287, %v471
        %v473 = vlaneseq
        %v474 = vshrl.u32 %v473, 7
        %v475 = vsub.s32 0, %v474
        %v476 = vrot.slane %v288, %v475
        %v477 = vlaneseq
        %v478 = vshrl.u32 %v477, 7
        %v479 = vsub.s32 0, %v478
        %v480 = vrot.slane %v289, %v479
        %v481 = vlaneseq
        %v482 = vshrl.u32 %v481, 7
        %v483 = vsub.s32 0, %v482
        %v484 = vrot.slane %v290, %v483
        %v485 = vlaneseq
        %v486 = vshrl.u32 %v485, 7
        %v487 = vsub.s32 0, %v486
        %v488 = vrot.slane %v291, %v487
        %v489 = vlaneseq
        %v490 = vshrl.u32 %v489, 7
        %v491 = vsub.s32 0, %v490
        %v492 = vrot.slane %v292, %v491
        %v493 = vlaneseq
        %v494 = vshrl.u32 %v493, 7
        %v495 = vsub.s32 0, %v494
        %v496 = vrot.slane %v293, %v495
        %v497 = vlaneseq
        %v498 = vshrl.u32 %v497, 7
        %v499 = vsub.s32 0, %v498
        %v500 = vrot.slane %v294, %v499
        %v501 = vlaneseq
        %v502 = vshrl.u32 %v501, 7
        %v503 = vsub.s32 0, %v502
        %v504 = vrot.slane %v295, %v503
        %v505 = vlaneseq
        %v506 = vshrl.u32 %v505, 7
        %v507 = vsub.s32 0, %v506
        %v508 = vrot.slane %v296, %v507
        %v509 = vlaneseq
        %v510 = vshrl.u32 %v509, 7
        %v511 = vsub.s32 0, %v510
        %v512 = vrot.slane %v297, %v511
        %v513 = vlaneseq
        %v514 = vshrl.u32 %v513, 7
        %v515 = vsub.s32 0, %v514
        %v516 = vrot.slane %v298, %v515
        %v517 = vlaneseq
        %v518 = vshrl.u32 %v517, 7
        %v519 = vsub.s32 0, %v518
        %v520 = vrot.slane %v299, %v519
        %v521 = vlaneseq
        %v522 = vshrl.u32 %v521, 7
        %v523 = vsub.s32 0, %v522
        %v524 = vrot.slane %v300, %v523
        %v525 = vlaneseq
        %v526 = vshrl.u32 %v525, 7
        %v527 = vsub.s32 0, %v526
        %v528 = vrot.slane %v301, %v527
        %v529 = vlaneseq
        %v530 = vshrl.u32 %v529, 7
        %v531 = vsub.s32 0, %v530
        %v532 = vrot.slane %v302, %v531
        %v533 = vlaneseq
        %v534 = vshrl.u32 %v533, 7
        %v535 = vsub.s32 0, %v534
        %v536 = vrot.slane %v303, %v535
        %v537 = vlaneseq
        %v538 = vshrl.u32 %v537, 7
        %v539 = vsub.s32 0, %v538
        %v540 = vrot.slane %v304, %v539
        %v541 = vlaneseq
        %v542 = vshrl.u32 %v541, 7
        %v543 = vsub.s32 0, %v542
        %v544 = vrot.slane %v305, %v543
        %v545 = vlaneseq
        %v546 = vshrl.u32 %v545, 7
        %v547 = vsub.s32 0, %v546
        %v548 = vrot.slane %v306, %v547
        %v549 = vlaneseq
        %v550 = vshrl.u32 %v549, 7
        %v551 = vsub.s32 0, %v550
        %v552 = vrot.slane %v307, %v551
        %v553 = vlaneseq
        %v554 = vshrl.u32 %v553, 7
        %v555 = vsub.s32 0, %v554
        %v556 = vrot.slane %v308, %v555
        %v557 = vlaneseq
        %v558 = vshrl.u32 %v557, 7
        %v559 = vsub.s32 0, %v558
        %v560 = vrot.slane %v309, %v559
        %v561 = vlaneseq
        %v562 = vshrl.u32 %v561, 7
        %v563 = vsub.s32 0, %v562
        %v564 = vrot.slane %v310, %v563
        %v565 = vlaneseq
        %v566 = vshrl.u32 %v565, 7
        %v567 = vsub.s32 0, %v566
        %v568 = vrot.slane %v311, %v567
        %v569 = vlaneseq
        %v570 = vshrl.u32 %v569, 7
        %v571 = vsub.s32 0, %v570
        %v572 = vrot.slane %v312, %v571
        %v573 = vlaneseq
        %v574 = vshrl.u32 %v573, 7
        %v575 = vsub.s32 0, %v574
        %v576 = vrot.slane %v313, %v575
        %v577 = vlaneseq
        %v578 = vshrl.u32 %v577, 7
        %v579 = vsub.s32 0, %v578
        %v580 = vrot.slane %v314, %v579
        %v581 = vlaneseq
        %v582 = vshrl.u32 %v581, 7
        %v583 = vsub.s32 0, %v582
        %v584 = vrot.slane %v315, %v583
        %v585 = vlaneseq
        %v586 = vshrl.u32 %v585, 7
        %v587 = vsub.s32 0, %v586
        %v588 = vrot.slane %v316, %v587
        %v589 = vlaneseq
        %v590 = vshrl.u32 %v589, 7
        %v591 = vsub.s32 0, %v590
        %v592 = vrot.slane %v317, %v591
        %v593 = vlaneseq
        %v594 = vshrl.u32 %v593, 7
        %v595 = vsub.s32 0, %v594
        %v596 = vrot.slane %v318, %v595
        %v597 = vlaneseq
        %v598 = vshrl.u32 %v597, 7
        %v599 = vsub.s32 0, %v598
        %v600 = vrot.slane %v319, %v599
        %v601 = vlaneseq
        %v602 = vshrl.u32 %v601, 7
        %v603 = vsub.s32 0, %v602
        %v604 = vrot.slane %v320, %v603
        %v605 = vlaneseq
        %v606 = vshrl.u32 %v605, 7
        %v607 = vsub.s32 0, %v606
        %v608 = vrot.slane %v321, %v607
        %v609 = vlaneseq
        %v610 = vshrl.u32 %v609, 7
        %v611 = vsub.s32 0, %v610
        %v612 = vrot.slane %v322, %v611
        %v613 = vlaneseq
        %v614 = vshrl.u32 %v613, 7
        %v615 = vsub.s32 0, %v614
        %v616 = vrot.slane %v323, %v615
        %v617 = vlaneseq
        %v618 = vshrl.u32 %v617, 7
        %v619 = vsub.s32 0, %v618
        %v620 = vrot.slane %v324, %v619
        %v621 = vlaneseq
        %v622 = vshrl.u32 %v621, 7
        %v623 = vsub.s32 0, %v622
        %v624 = vrot.slane %v325, %v623
        %v625 = vlaneseq
        %v626 = vshrl.u32 %v625, 7
        %v627 = vsub.s32 0, %v626
        %v628 = vrot.slane %v326, %v627
        %v629 = vlaneseq
        %v630 = vshrl.u32 %v629, 7
        %v631 = vsub.s32 0, %v630
        %v632 = vrot.slane %v327, %v631
        %v633 = vlaneseq
        %v634 = vshrl.u32 %v633, 7
        %v635 = vsub.s32 0, %v634
        %v636 = vrot.slane %v328, %v635
        %v637 = vlaneseq
        %v638 = vshrl.u32 %v637, 7
        %v639 = vsub.s32 0, %v638
        %v640 = vrot.slane %v329, %v639
        %v641 = vlaneseq
        %v642 = vshrl.u32 %v641, 7
        %v643 = vsub.s32 0, %v642
        %v644 = vrot.slane %v330, %v643
        %v645 = vlaneseq
        %v646 = vshrl.u32 %v645, 7
        %v647 = vsub.s32 0, %v646
        %v648 = vrot.slane %v331, %v647
        %v649 = vlaneseq
        %v650 = vshrl.u32 %v649, 7
        %v651 = vsub.s32 0, %v650
        %v652 = vrot.slane %v332, %v651
        %v717 = vadd.f32 %v205, %v400
        %v718 = vadd.f32 %v206, %v404
        %v719 = vadd.f32 %v207, %v408
        %v720 = vadd.f32 %v208, %v412
        %v721 = vadd.f32 %v209, %v416
        %v722 = vadd.f32 %v210, %v420
        %v723 = vadd.f32 %v211, %v424
        %v724 = vadd.f32 %v212, %v428
        %v725 = vadd.f32 %v213, %v432
        %v726 = vadd.f32 %v214, %v436
        %v727 = vadd.f32 %v215, %v440
        %v728 = vadd.f32 %v216, %v444
        %v729 = vadd.f32 %v217, %v448
        %v730 = vadd.f32 %v218, %v452
        %v731 = vadd.f32 %v219, %v456
        %v732 = vadd.f32 %v220, %v460
        %v733 = vadd.f32 %v221, %v464
        %v734 = vadd.f32 %v222, %v468
        %v735 = vadd.f32 %v223, %v472
        %v736 = vadd.f32 %v224, %v476
        %v737 = vadd.f32 %v225, %v480
        %v738 = vadd.f32 %v226, %v484
        %v739 = vadd.f32 %v227, %v488
        %v740 = vadd.f32 %v228, %v492
        %v741 = vadd.f32 %v229, %v496
        %v742 = vadd.f32 %v230, %v500
        %v743 = vadd.f32 %v231, %v504
        %v744 = vadd.f32 %v232, %v508
        %v745 = vadd.f32 %v233, %v512
        %v746 = vadd.f32 %v234, %v516
        %v747 = vadd.f32 %v235, %v520
        %v748 = vadd.f32 %v236, %v524
        %v749 = vadd.f32 %v237, %v528
        %v750 = vadd.f32 %v238, %v532
        %v751 = vadd.f32 %v239, %v536
        %v752 = vadd.f32 %v240, %v540
        %v753 = vadd.f32 %v241, %v544
        %v754 = vadd.f32 %v242, %v548
        %v755 = vadd.f32 %v243, %v552
        %v756 = vadd.f32 %v244, %v556
        %v757 = vadd.f32 %v245, %v560
        %v758 = vadd.f32 %v246, %v564
        %v759 = vadd.f32 %v247, %v568
        %v760 = vadd.f32 %v248, %v572
        %v761 = vadd.f32 %v249, %v576
        %v762 = vadd.f32 %v250, %v580
        %v763 = vadd.f32 %v251, %v584
        %v764 = vadd.f32 %v252, %v588
        %v765 = vadd.f32 %v253, %v592
        %v766 = vadd.f32 %v254, %v596
        %v767 = vadd.f32 %v255, %v600
        %v768 = vadd.f32 %v256, %v604
        %v769 = vadd.f32 %v257, %v608
        %v770 = vadd.f32 %v258, %v612
        %v771 = vadd.f32 %v259, %v616
        %v772 = vadd.f32 %v260, %v620
        %v773 = vadd.f32 %v261, %v624
        %v774 = vadd.f32 %v262, %v628
        %v775 = vadd.f32 %v263, %v632
        %v776 = vadd.f32 %v264, %v636
        %v777 = vadd.f32 %v265, %v640
        %v778 = vadd.f32 %v266, %v644
        %v779 = vadd.f32 %v267, %v648
        %v780 = vadd.f32 %v268, %v652
        %781 = vst [vmem:[%s201] sm:$0xf] %v717
        %782 = vst [vmem:[%s201 + $0x4] sm:$0xf] %v718
        %783 = vst [vmem:[%s201 + $0x8] sm:$0xf] %v719
        %784 = vst [vmem:[%s201 + $0xc] sm:$0xf] %v720
        %785 = vst [vmem:[%s201 + $0x10] sm:$0xf] %v721
        %786 = vst [vmem:[%s201 + $0x14] sm:$0xf] %v722
        %787 = vst [vmem:[%s201 + $0x18] sm:$0xf] %v723
        %788 = vst [vmem:[%s201 + $0x1c] sm:$0xf] %v724
        %789 = vst [vmem:[%s201 + $0x20] sm:$0xf] %v725
        %790 = vst [vmem:[%s201 + $0x24] sm:$0xf] %v726
        %791 = vst [vmem:[%s201 + $0x28] sm:$0xf] %v727
        %792 = vst [vmem:[%s201 + $0x2c] sm:$0xf] %v728
        %793 = vst [vmem:[%s201 + $0x30] sm:$0xf] %v729
        %794 = vst [vmem:[%s201 + $0x34] sm:$0xf] %v730
        %795 = vst [vmem:[%s201 + $0x38] sm:$0xf] %v731
        %796 = vst [vmem:[%s201 + $0x3c] sm:$0xf] %v732
        %797 = vst [vmem:[%s201 + $0x40] sm:$0xf] %v733
        %798 = vst [vmem:[%s201 + $0x44] sm:$0xf] %v734
        %799 = vst [vmem:[%s201 + $0x48] sm:$0xf] %v735
        %800 = vst [vmem:[%s201 + $0x4c] sm:$0xf] %v736
        %801 = vst [vmem:[%s201 + $0x50] sm:$0xf] %v737
        %802 = vst [vmem:[%s201 + $0x54] sm:$0xf] %v738
        %803 = vst [vmem:[%s201 + $0x58] sm:$0xf] %v739
        %804 = vst [vmem:[%s201 + $0x5c] sm:$0xf] %v740
        %805 = vst [vmem:[%s201 + $0x60] sm:$0xf] %v741
        %806 = vst [vmem:[%s201 + $0x64] sm:$0xf] %v742
        %807 = vst [vmem:[%s201 + $0x68] sm:$0xf] %v743
        %808 = vst [vmem:[%s201 + $0x6c] sm:$0xf] %v744
        %809 = vst [vmem:[%s201 + $0x70] sm:$0xf] %v745
        %810 = vst [vmem:[%s201 + $0x74] sm:$0xf] %v746
        %811 = vst [vmem:[%s201 + $0x78] sm:$0xf] %v747
        %812 = vst [vmem:[%s201 + $0x7c] sm:$0xf] %v748
        %813 = vst [vmem:[%s201 + $0x80] sm:$0xf] %v749
        %814 = vst [vmem:[%s201 + $0x84] sm:$0xf] %v750
        %815 = vst [vmem:[%s201 + $0x88] sm:$0xf] %v751
        %816 = vst [vmem:[%s201 + $0x8c] sm:$0xf] %v752
        %817 = vst [vmem:[%s201 + $0x90] sm:$0xf] %v753
        %818 = vst [vmem:[%s201 + $0x94] sm:$0xf] %v754
        %819 = vst [vmem:[%s201 + $0x98] sm:$0xf] %v755
        %820 = vst [vmem:[%s201 + $0x9c] sm:$0xf] %v756
        %821 = vst [vmem:[%s201 + $0xa0] sm:$0xf] %v757
        %822 = vst [vmem:[%s201 + $0xa4] sm:$0xf] %v758
        %823 = vst [vmem:[%s201 + $0xa8] sm:$0xf] %v759
        %824 = vst [vmem:[%s201 + $0xac] sm:$0xf] %v760
        %825 = vst [vmem:[%s201 + $0xb0] sm:$0xf] %v761
        %826 = vst [vmem:[%s201 + $0xb4] sm:$0xf] %v762
        %827 = vst [vmem:[%s201 + $0xb8] sm:$0xf] %v763
        %828 = vst [vmem:[%s201 + $0xbc] sm:$0xf] %v764
        %829 = vst [vmem:[%s201 + $0xc0] sm:$0xf] %v765
        %830 = vst [vmem:[%s201 + $0xc4] sm:$0xf] %v766
        %831 = vst [vmem:[%s201 + $0xc8] sm:$0xf] %v767
        %832 = vst [vmem:[%s201 + $0xcc] sm:$0xf] %v768
        %833 = vst [vmem:[%s201 + $0xd0] sm:$0xf] %v769
        %834 = vst [vmem:[%s201 + $0xd4] sm:$0xf] %v770
        %835 = vst [vmem:[%s201 + $0xd8] sm:$0xf] %v771
        %836 = vst [vmem:[%s201 + $0xdc] sm:$0xf] %v772
        %837 = vst [vmem:[%s201 + $0xe0] sm:$0xf] %v773
        %838 = vst [vmem:[%s201 + $0xe4] sm:$0xf] %v774
        %839 = vst [vmem:[%s201 + $0xe8] sm:$0xf] %v775
        %840 = vst [vmem:[%s201 + $0xec] sm:$0xf] %v776
        %841 = vst [vmem:[%s201 + $0xf0] sm:$0xf] %v777
        %842 = vst [vmem:[%s201 + $0xf4] sm:$0xf] %v778
        %843 = vst [vmem:[%s201 + $0xf8] sm:$0xf] %v779
        %844 = vst [vmem:[%s201 + $0xfc] sm:$0xf] %v780
        %s845 = sand.u32 %s82, 1
        %s846 = scalar_lea.sflag [#allocation4], %s845
        %s847 = sand.u32 %s82, 1
        %s848 = smul.addr %s847, 256
        %s849 = scalar_lea.vmem [#allocation7], %s848
        // Predicated region
        $region37: #{tpu_custom_call.1} parent=27 // pred_check
          %p850 = pneg %p92
        $region38: #{tpu_custom_call.1} parent=27 // pred_check_branch
          %852 = sbr.rel (%p850) target = $region40
        $region39: #{tpu_custom_call.1} parent=27 // pred_region
          %s853 = smul.u32 64, %s22
          %s855 = ssub.s32 4096, 4096
          %856 = vsyncadd %s846, %s855
          %s857 = smul.addr %s853, 64
          %s858 = scalar_lea.hbm %s2, %s857
          %s859 = sshll.u32 %s849, 4
          %s860 = int_to_ptr.vmem [resolvable:$true] %s859
          %865 = dma.vmem_to_hbm [thread:$0]  %s860, 4096, %s858, %s846, 64, 64, 4
        $region40: #{tpu_custom_call.1} parent=27 // pred_fallthru
          _
      $region28: #{tpu_custom_call.1} parent=5 // pred_fallthru
        _
      %p866 = scmp.le.s32.totalorder 2, %s17
      // Predicated region
      $region41: #{tpu_custom_call.1} parent=5 // pred_check
        %p867 = pneg %p866
      $region42: #{tpu_custom_call.1} parent=5 // pred_check_branch
        %869 = sbr.rel (%p867) target = $region44
      $region43: #{tpu_custom_call.1} parent=5 // pred_region
        %s870 = ssub.s32 %s17, 2
        // Predicated region
        $region45: #{tpu_custom_call.1} parent=43 // pred_check
          %p871 = pneg %p98
        $region46: #{tpu_custom_call.1} parent=43 // pred_check_branch
          %873 = sbr.rel (%p871) target = $region48
        $region47: #{tpu_custom_call.1} parent=43 // pred_region
          %s874 = sand.u32 %s83, 1
          %s875 = scalar_lea.sflag [#allocation4], %s874
          %s876 = sand.u32 %s83, 1
          %s877 = smul.addr %s876, 256
          %s878 = scalar_lea.vmem [#allocation7], %s877
          %879 = dma.done %s875, 4096
        $region48: #{tpu_custom_call.1} parent=43 // pred_fallthru
          _
      $region44: #{tpu_custom_call.1} parent=5 // pred_fallthru
        _
    $region6: #{tpu_custom_call.1} parent=1 // loop_footer
      %s21 = sadd.s32 1, %s17
    $region7: #{tpu_custom_call.1} parent=1 // loop_footer_branch
      %16 = sbr.rel target = $region3
    $region8: #{tpu_custom_call.1} parent=1 // loop_exit
      _
    %880 = vsyncpa [#allocation3], 1
    %s881 = scalar_lea.sflag [#allocation3], 1
    %882 = vsyncpa %s881, 1
    %883 = vsyncpa [#allocation6], 1
    %s884 = scalar_lea.sflag [#allocation6], 1
    %885 = vsyncpa %s884, 1
    %886 = vsyncpa [#allocation4], 1
    %s887 = scalar_lea.sflag [#allocation4], 1
    %888 = vsyncpa %s887, 1

</llo_original>
